<compile_context>
chip_gen: v5e
topology: v5e:2x2
jax: 0.10.0
libtpu: 0.0.40
codegen_flags: <defaults>
</compile_context>

<pallas_src>
import math
import functools

import jax
import jax.numpy as jnp
from jax.experimental import pallas as pl
from jax.experimental.pallas import tpu as pltpu


_VALID_ACTIVATIONS = (None, "sin", "relu", "tanh")


def _round_up(x, m):
    return ((x + m - 1) // m) * m


def single_layer_kernel(x_ref, w_ref, b_ref, o_ref, *, activation):
    x = x_ref[...]
    w = w_ref[...]
    if x.dtype != w.dtype:
        # In-kernel cast (VPU) -- avoids a separate XLA HBM pass over x.
        x = x.astype(w.dtype)
    # MXU matmul with f32 accumulation; omega already folded into w/b.
    z = jnp.dot(x, w, preferred_element_type=jnp.float32)
    z = z + b_ref[...]                      # (1, TN) f32 bias broadcasts over rows
    if activation == "sin":
        # TODO(synk): on v7x the VPU sin polynomial may become the binding slot
        # once HBM time halves; a range-reduced bf16 polynomial would help there.
        z = jnp.sin(z)
    elif activation == "relu":
        z = jnp.maximum(z, 0.0)
    elif activation == "tanh":
        z = jnp.tanh(z)
    # activation is None -> identity
    o_ref[...] = z.astype(o_ref.dtype)


def prepare_params(w, b, omega, *, operand_dtype=jnp.bfloat16):
    """One-time parameter prep (NOT per forward call).

    w: (out_features, in_features) PyTorch convention, b: (out_features,) or None.
    Returns (w_t_pad, b_pad, out_features):
      w_t_pad: (in_features, out_pad), omega folded in, out_pad % 128 == 0
      b_pad:   (1, out_pad) float32,  omega folded in
    """
    out_features, in_features = w.shape
    out_pad = _round_up(out_features, 128)

    w_t = w.astype(jnp.float32).T * omega                    # (in, out)
    b_vec = jnp.zeros((out_features,), jnp.float32) if b is None \
        else b.astype(jnp.float32)
    b_row = (b_vec * omega).reshape(1, out_features)

    if out_pad != out_features:
        w_t = jnp.pad(w_t, ((0, 0), (0, out_pad - out_features)))
        b_row = jnp.pad(b_row, ((0, 0), (0, out_pad - out_features)))

    # TODO(synk): optionally pad in_features to a 128/256 multiple for MXU
    # alignment; needs K-padded x from upstream, so it is left to the caller.
    return w_t.astype(operand_dtype), b_row, out_features


def single_layer_forward(x, w_t_pad, b_pad, out_features, *, activation,
                         tm=512, tn=2048, out_dtype=jnp.float32,
                         slice_output=True):
    """x: (N, in_features); w_t_pad: (in, out_pad); b_pad: (1, out_pad).

    Returns (N, out_features) if slice_output else (N, out_pad), dtype out_dtype.
    """
    if activation not in _VALID_ACTIVATIONS:
        raise ValueError(f"Invalid activation: {activation!r}")

    N, K = x.shape
    assert w_t_pad.shape[0] == K and b_pad.shape == (1, w_t_pad.shape[1])
    out_pad = w_t_pad.shape[1]

    # Row tile: multiple of 8 sublanes; force >= 2 grid steps when N allows so
    # the "parallel" row axis shards across v7x's two TensorCores.
    TM = max(8, min(tm, _round_up(N, 8), _round_up(pl.cdiv(N, 2), 8)))
    gi = pl.cdiv(N, TM)

    # Column tile: lane-dense (multiple of 128); single tile in the common case.
    TN = min(out_pad, _round_up(tn, 128))
    gj = pl.cdiv(out_pad, TN)

    x_spec = pl.BlockSpec((TM, K), lambda i, j: (i, 0))
    if gj == 1:
        # Grid-invariant weights/bias -> single-buffered (halves VMEM footprint).
        w_spec = pl.BlockSpec((K, TN), lambda i, j: (0, j),
                              pipeline_mode=pl.Buffered(1))
        b_spec = pl.BlockSpec((1, TN), lambda i, j: (0, j),
                              pipeline_mode=pl.Buffered(1))
        w_bufs = 1
    else:
        w_spec = pl.BlockSpec((K, TN), lambda i, j: (0, j))
        b_spec = pl.BlockSpec((1, TN), lambda i, j: (0, j))
        w_bufs = 2
    o_spec = pl.BlockSpec((TM, TN), lambda i, j: (i, j))

    # VMEM budget: double-buffered x/out tiles + w_bufs-buffered weights/bias,
    # 2x headroom, capped at 64 MiB (v7x physical per-TC VMEM).
    x_it = jnp.dtype(x.dtype).itemsize
    w_it = jnp.dtype(w_t_pad.dtype).itemsize
    o_it = jnp.dtype(out_dtype).itemsize
    needed = (2 * TM * K * x_it
              + w_bufs * (K * TN * w_it + TN * 4)
              + 2 * TM * TN * o_it)
    vmem_limit = int(min(64 << 20, max(32 << 20, 2 * needed)))

    cost = pl.CostEstimate(
        flops=2 * N * K * out_pad,
        transcendentals=(N * out_pad) if activation in ("sin", "tanh") else 0,
        bytes_accessed=N * K * x_it + K * out_pad * w_it + N * out_pad * o_it,
    )

    kernel = functools.partial(single_layer_kernel, activation=activation)

    out = pl.pallas_call(
        kernel,
        out_shape=jax.ShapeDtypeStruct((N, out_pad), out_dtype),
        grid=(gi, gj),
        in_specs=[x_spec, w_spec, b_spec],
        out_specs=o_spec,
        compiler_params=pltpu.CompilerParams(
            dimension_semantics=("parallel", "parallel"),
            vmem_limit_bytes=vmem_limit,
        ),
        cost_estimate=cost,
    )(x, w_t_pad, b_pad)

    if slice_output and out_pad != out_features:
        out = out[:, :out_features]
    return out


def init_single_layer_params(key, in_features, out_features, *, activation,
                             bias, is_first):
    """Deterministic re-implementation of SingleLayer.init_weights."""
    omega = 30.0 if activation == "sin" else 1.0
    if is_first:
        bound = 1.0 / in_features
    else:
        bound = math.sqrt(6.0 / in_features) / omega
    # PyTorch stores weight as (out, in); keep that convention.
    w = jax.random.uniform(
        key, (out_features, in_features), minval=-bound, maxval=bound,
        dtype=jnp.float32,
    )
    b = jnp.zeros((out_features,), dtype=jnp.float32) if bias else None
    return w, b, omega


if __name__ == "__main__":
    key = jax.random.PRNGKey(0)
    k_w, k_x = jax.random.split(key)

    # Small demo shapes consistent with the module.
    batch = 8
    in_features = 32
    out_features = 32
    activation = "sin"
    use_bias = True
    is_first = True

    w, b, omega = init_single_layer_params(
        k_w, in_features, out_features,
        activation=activation, bias=use_bias, is_first=is_first,
    )
    x = jax.random.normal(k_x, (batch, in_features), dtype=jnp.float32)

    # Plain-JAX reference (same math as the PyTorch forward).
    b_ref = b if b is not None else jnp.zeros((out_features,), jnp.float32)
    ref = jnp.sin(omega * (x @ w.T + b_ref))

    # --- f32-operand path: tight reference check --------------------------
    w_t32, b_row32, n_out = prepare_params(w, b, omega,
                                           operand_dtype=jnp.float32)
    out32 = single_layer_forward(x, w_t32, b_row32, n_out,
                                 activation=activation)
    out32 = jax.block_until_ready(out32)
    assert out32.shape == (batch, out_features)
    assert jnp.allclose(out32, ref, atol=1e-4, rtol=1e-5), "f32 path mismatch"

    # --- default bf16-operand path (f32 accumulation), looser tolerance ---
    w_t16, b_row16, _ = prepare_params(w, b, omega)      # bf16 operands
    out16 = single_layer_forward(x.astype(jnp.bfloat16), w_t16, b_row16, n_out,
                                 activation=activation)
    out16 = jax.block_until_ready(out16)
    assert out16.shape == (batch, out_features)
    assert jnp.allclose(out16, ref, atol=1e-1), "bf16 path mismatch"

    print("KERNEL_OK")
</pallas_src>

<mosaic_0001>
module attributes {stable_mosaic.version = 11 : i64} {
  func.func @single_layer_kernel(%arg0: i32, %arg1: i32, %arg2: memref<8x32xf32, #tpu.memory_space<vmem>>, %arg3: memref<32x128xf32, #tpu.memory_space<vmem>>, %arg4: memref<1x128xf32, #tpu.memory_space<vmem>>, %arg5: memref<8x128xf32, #tpu.memory_space<vmem>>) attributes {dimension_semantics = [#tpu.dimension_semantics<parallel>, #tpu.dimension_semantics<parallel>], iteration_bounds = array<i64: 1, 1>, scalar_prefetch = 0 : i64, scratch_operands = 0 : i64, tpu.core_type = #tpu.core_type<tc>, window_params = [{transform_indices = @transform_0, window_bounds = array<i64: 8, 32>}, {pipeline_mode = #tpu.pipeline_mode<synchronous>, transform_indices = @transform_1, window_bounds = array<i64: 32, 128>}, {pipeline_mode = #tpu.pipeline_mode<synchronous>, transform_indices = @transform_2, window_bounds = array<i64: 1, 128>}, {transform_indices = @transform_3, window_bounds = array<i64: 8, 128>}]} {
    %c0 = arith.constant 0 : index
    %c0_0 = arith.constant 0 : index
    %0 = vector.load %arg2[%c0, %c0_0] : memref<8x32xf32, #tpu.memory_space<vmem>>, vector<8x32xf32>
    %c0_1 = arith.constant 0 : index
    %c0_2 = arith.constant 0 : index
    %1 = vector.load %arg3[%c0_1, %c0_2] : memref<32x128xf32, #tpu.memory_space<vmem>>, vector<32x128xf32>
    %cst = arith.constant dense<0.000000e+00> : vector<8x128xf32>
    %2 = tpu.matmul %0, %1, %cst {dimension_numbers = #tpu.dot_dimension_numbers<[1], [0], [0], [1], [0, 0, 1, 1], [], []>} : vector<8x32xf32>, vector<32x128xf32>, vector<8x128xf32> -> vector<8x128xf32>
    %c0_3 = arith.constant 0 : index
    %c0_4 = arith.constant 0 : index
    %3 = vector.load %arg4[%c0_3, %c0_4] : memref<1x128xf32, #tpu.memory_space<vmem>>, vector<1x128xf32>
    %4 = vector.broadcast %3 : vector<1x128xf32> to vector<8x128xf32>
    %5 = arith.addf %2, %4 : vector<8x128xf32>
    %6 = math.sin %5 : vector<8x128xf32>
    %c0_5 = arith.constant 0 : index
    %c0_6 = arith.constant 0 : index
    %7 = vector.load %arg5[%c0_5, %c0_6] : memref<8x128xf32, #tpu.memory_space<vmem>>, vector<8x128xf32>
    tpu.vector_store %arg5[%c0_5, %c0_6], %6 {strides = array<i32>} : memref<8x128xf32, #tpu.memory_space<vmem>>, vector<8x128xf32>,
    return
  }
  func.func @transform_0(%arg0: i32, %arg1: i32) -> (i32, i32) {
    %c0_i32 = arith.constant 0 : i32
    %c0_i32_0 = arith.constant 0 : i32
    return %arg0, %c0_i32 : i32, i32
  }
  func.func @transform_1(%arg0: i32, %arg1: i32) -> (i32, i32) {
    %c0_i32 = arith.constant 0 : i32
    %c0_i32_0 = arith.constant 0 : i32
    return %c0_i32, %arg1 : i32, i32
  }
  func.func @transform_2(%arg0: i32, %arg1: i32) -> (i32, i32) {
    %c0_i32 = arith.constant 0 : i32
    %c0_i32_0 = arith.constant 0 : i32
    return %c0_i32, %arg1 : i32, i32
  }
  func.func @transform_3(%arg0: i32, %arg1: i32) -> (i32, i32) {
    %c0_i32 = arith.constant 0 : i32
    return %arg0, %arg1 : i32, i32
  }
}

</mosaic_0001>

<llo_original>
// kernel: tpu_custom_call.1
$region0: #{tpu_custom_call.1}
  #allocation0 [shape = 'u32[]', space=smem, size = 0x4, offset = 0x4, fixed_abs, tag = 'smem constant byte address 0x4 - core index']
  #allocation1 [shape = 'u32[72,128]{1,0:T(1,128)}', space=vmem, size = 0x9000, scoped, tag = 'internal scratch']
  %s0 = inlined_call_operand.hbm [shape: f32[8,32], index: 0, kind: input, shape index: {}]
  %s1 = inlined_call_operand.hbm [shape: f32[32,128], index: 1, kind: input, shape index: {}]
  %s2 = inlined_call_operand.vmem [shape: f32[1,128], index: 2, kind: input, shape index: {}]
  %s3 = inlined_call_operand.hbm [shape: f32[8,128], index: 3, kind: output, shape index: {}]
  %s4 = sld [smem:[#allocation0]]
  $region30: #{tpu_custom_call.1} parent=0
    _
  %s6 = ssub.s32 1, %s4
  %s7 = scalar_select 0, %s6, %s4
  $region1: #{tpu_custom_call.1} parent=0
    #allocation2 [shape = 'u8[4096]{0}', space=vmem, size = 0x1000, scoped, tag = 'input window, operand 0, single buffered']
    #allocation3 [shape = 's32[1]{0}', space=sflag, size = 0x4, scoped, tag = 'scoped memory for tpu_custom_call.1']
    #allocation4 [shape = 's32[1]{0}', space=sflag, size = 0x4, scoped, tag = 'scoped memory for tpu_custom_call.1']
    #allocation5 [shape = 'u8[16384]{0}', space=vmem, size = 0x4000, scoped, tag = 'input window, operand 1, single buffered']
    #allocation6 [shape = 's32[1]{0}', space=sflag, size = 0x4, scoped, tag = 'scoped memory for tpu_custom_call.1']
    #allocation7 [shape = 'u8[4096]{0}', space=vmem, size = 0x1000, scoped, tag = 'output window, operand 0, single buffered']
    %8 = vsyncpa [#allocation3], 0
    %9 = vsyncpa [#allocation6], 0
    %10 = vsyncpa [#allocation4], 0
    // Predicated region
    $region2: #{tpu_custom_call.1} parent=1 // pred_check
      _
    $region3: #{tpu_custom_call.1} parent=1 // pred_check_branch
      %12 = sbr.rel (0) target = $region5
    $region4: #{tpu_custom_call.1} parent=1 // pred_region
      %14 = vsyncadd [#allocation3], 0
      %s16 = sshll.u32 %s0, 4
      %s17 = int_to_ptr.hbm [resolvable:$true] %s16
      %s18 = sshll.u32 [#allocation2], 4
      %s19 = int_to_ptr.vmem [resolvable:$true] %s18
      %21 = dma.hbm_to_vmem [thread:$0]  %s17, 128, %s19, [#allocation3]
    $region5: #{tpu_custom_call.1} parent=1 // pred_fallthru
      _
    // Predicated region
    $region6: #{tpu_custom_call.1} parent=1 // pred_check
      _
    $region7: #{tpu_custom_call.1} parent=1 // pred_check_branch
      %23 = sbr.rel (0) target = $region9
    $region8: #{tpu_custom_call.1} parent=1 // pred_region
      %25 = vsyncadd [#allocation6], 0
      %s26 = sshll.u32 %s1, 4
      %s27 = int_to_ptr.hbm [resolvable:$true] %s26
      %s28 = sshll.u32 [#allocation5], 4
      %s29 = int_to_ptr.vmem [resolvable:$true] %s28
      %34 = dma.hbm_to_vmem [thread:$0]  %s27, 512, %s29, [#allocation6], 128, 128, 8
    $region9: #{tpu_custom_call.1} parent=1 // pred_fallthru
      _
    // Predicated region
    $region10: #{tpu_custom_call.1} parent=1 // pred_check
      _
    $region11: #{tpu_custom_call.1} parent=1 // pred_check_branch
      %36 = sbr.rel (0) target = $region13
    $region12: #{tpu_custom_call.1} parent=1 // pred_region
      _
    $region13: #{tpu_custom_call.1} parent=1 // pred_fallthru
      _
    // Predicated region
    $region14: #{tpu_custom_call.1} parent=1 // pred_check
      _
    $region15: #{tpu_custom_call.1} parent=1 // pred_check_branch
      %38 = sbr.rel (0) target = $region17
    $region16: #{tpu_custom_call.1} parent=1 // pred_region
      %40 = dma.done [#allocation3], 128
    $region17: #{tpu_custom_call.1} parent=1 // pred_fallthru
      _
    // Predicated region
    $region18: #{tpu_custom_call.1} parent=1 // pred_check
      _
    $region19: #{tpu_custom_call.1} parent=1 // pred_check_branch
      %42 = sbr.rel (0) target = $region21
    $region20: #{tpu_custom_call.1} parent=1 // pred_region
      %44 = dma.done [#allocation6], 512
    $region21: #{tpu_custom_call.1} parent=1 // pred_fallthru
      _
    %v45 = vld [vmem:[#allocation2] sm:$0xff]
    %v46 = vld [vmem:[#allocation5] sm:$0xff]
    %v47 = vld [vmem:[#allocation5 + $0x8] sm:$0xff]
    %v48 = vld [vmem:[#allocation5 + $0x10] sm:$0xff]
    %v49 = vld [vmem:[#allocation5 + $0x18] sm:$0xff]
    %v50 = vld [vmem:[%s2] sm:$0x1]
    %v52 = vperm.slane %v50, 0
    %vm54 = vcmask 261120
    %v56 = vsel %vm54, %v45, 0
    %58 = vmatpush.msra.mxu0 0.0
    %59 = vmatpush.msra.mxu0 0.0
    %60 = vmatpush.msra.mxu0 0.0
    %61 = vmatpush.msra.mxu0 0.0
    %62 = vmatpush.msra.mxu0 0.0
    %63 = vmatpush.msra.mxu0 0.0
    %64 = vmatpush.msra.mxu0 0.0
    %65 = vmatpush.msra.mxu0 0.0
    %66 = vmatpush.msra.mxu0 0.0
    %67 = vmatpush.msra.mxu0 0.0
    %68 = vmatpush.msra.mxu0 0.0
    %69 = vmatpush.msra.mxu0 0.0
    %70 = vmatpush.msra.mxu0 %v49
    %71 = vmatpush.msra.mxu0 %v48
    %72 = vmatpush.msra.mxu0 %v47
    %73 = vmatpush.msra.mxu0 %v46
    %74 = vmatmul.f32.gmra.mxu0 %v56
    %v75 = vpop.f32.mrf.mxu0
    %v76 = vadd.f32 %v52, %v75
    %77 = vdwg.mxu0
    %v78 = vand.u32 2147483647, %v76
    %vm79 = vcmp.le.f32.partialorder %v78, 0.7853982
    %vm80 = vcmp.lt.s32.totalorder %v76, 0
    %v81 = vand.u32 %v76, 2139095040
    %v82 = vshrl.u32 %v81, 23
    %v83 = vsub.s32 %v82, 127
    %v84 = vand.u32 2147483647, %v76
    %v85 = vand.u32 %v84, 8388607
    %v86 = vor.u32 %v85, 8388608
    %v87 = vsub.s32 0, %v86
    %v88 = vadd.s32 %v83, 1
    %vm89 = vcmp.gt.s32.totalorder %v88, 0
    %v90 = vsel %vm89, %v88, 0
    %v91 = vshrl.u32 %v90, 5
    %v92 = vand.u32 %v90, 31
    %v93 = vsub.s32 32, %v92
    %v94 = vshrl.u32 683565275, %v93
    %v95 = vshll.u32 683565275, %v92
    %v96 = vshrl.u32 2475754826, %v93
    %v97 = vor.u32 %v95, %v96
    %v98 = vshll.u32 2475754826, %v92
    %v99 = vshrl.u32 2131351028, %v93
    %v100 = vor.u32 %v98, %v99
    %v101 = vshll.u32 2131351028, %v92
    %v102 = vshrl.u32 2102212464, %v93
    %v103 = vor.u32 %v101, %v102
    %v104 = vshll.u32 2102212464, %v92
    %v105 = vshrl.u32 920167782, %v93
    %v106 = vor.u32 %v104, %v105
    %v107 = vshll.u32 920167782, %v92
    %v108 = vshrl.u32 1326507024, %v93
    %v109 = vor.u32 %v107, %v108
    %vm110 = vcmp.lt.s32.totalorder %v91, 1
    %vm111 = vcmp.lt.s32.totalorder %v91, 2
    %vm112 = vcmp.lt.s32.totalorder %v91, 3
    %vm113 = vcmp.lt.s32.totalorder %v91, 4
    %v114 = vsel %vm110, %v94, %v97
    %v115 = vsel %vm113, %v103, 2102212464
    %v116 = vsel %vm112, %v100, %v115
    %v117 = vsel %vm111, %v114, %v116
    %v118 = vsel %vm110, %v97, %v100
    %v119 = vsel %vm113, %v106, 920167782
    %v120 = vsel %vm112, %v103, %v119
    %v121 = vsel %vm111, %v118, %v120
    %v122 = vsel %vm110, %v100, %v103
    %v123 = vsel %vm113, %v109, 1326507024
    %v124 = vsel %vm112, %v106, %v123
    %v125 = vsel %vm111, %v122, %v124
    %v126 = vshll.u32 %v86, 8
    %v127 = vand.u32 %v126, 65535
    %v128 = vshrl.u32 %v126, 16
    %v129 = vand.u32 %v125, 65535
    %v130 = vshrl.u32 %v125, 16
    %v131 = vmul.u32 %v127, %v129
    %v132 = vmul.u32 %v127, %v130
    %v133 = vmul.u32 %v128, %v129
    %v134 = vmul.u32 %v128, %v130
    %v135 = vshll.u32 %v132, 16
    %v136 = vshrl.u32 %v132, 16
    %v137 = vshll.u32 %v133, 16
    %v138 = vshrl.u32 %v133, 16
    %vm139 = vc.u32 %v131, %v135
    %v140 = vsel %vm139, 1, 0
    %v141 = vadd.s32 %v131, %v135
    %v142 = vadd.s32 %v134, %v140
    %vm143 = vc.u32 %v141, %v137
    %v144 = vsel %vm143, 1, 0
    %v145 = vadd.s32 %v141, %v137
    %v146 = vadd.s32 %v142, %v144
    %v147 = vadd.s32 %v146, %v136
    %v148 = vadd.s32 %v147, %v138
    %v149 = vand.u32 %v126, 65535
    %v150 = vshrl.u32 %v126, 16
    %v151 = vand.u32 %v121, 65535
    %v152 = vshrl.u32 %v121, 16
    %v153 = vmul.u32 %v149, %v151
    %v154 = vmul.u32 %v149, %v152
    %v155 = vmul.u32 %v150, %v151
    %v156 = vmul.u32 %v150, %v152
    %v157 = vshll.u32 %v154, 16
    %v158 = vshrl.u32 %v154, 16
    %v159 = vshll.u32 %v155, 16
    %v160 = vshrl.u32 %v155, 16
    %vm161 = vc.u32 %v153, %v157
    %v162 = vsel %vm161, 1, 0
    %v163 = vadd.s32 %v153, %v157
    %v164 = vadd.s32 %v156, %v162
    %vm165 = vc.u32 %v163, %v159
    %v166 = vsel %vm165, 1, 0
    %v167 = vadd.s32 %v163, %v159
    %v168 = vadd.s32 %v164, %v166
    %v169 = vadd.s32 %v168, %v158
    %v170 = vadd.s32 %v169, %v160
    %v171 = vmul.u32 %v126, %v117
    %v172 = vadd.s32 %v148, %v167
    %vm173 = vc.u32 %v148, %v167
    %v174 = vadd.s32 %v170, 1
    %v175 = vsel %vm173, %v174, %v170
    %v176 = vadd.s32 %v171, %v175
    %v177 = vadd.s32 %v176, 536870912
    %v178 = vshrl.u32 %v177, 30
    %v179 = vshll.u32 %v178, 30
    %v180 = vsub.s32 %v176, %v179
    %vm181 = vcmp.lt.s32.totalorder %v180, 0
    %v182 = vsub.s32 0, %v180
    %v183 = vsel %vm181, %v182, %v180
    %v184 = vclz %v183
    %v185 = vsub.s32 %v184, 2
    %vm186 = vcmp.gt.s32.totalorder 0, %v185
    %v187 = vsel %vm186, 0, %v185
    %v188 = vsub.s32 32, %v187
    %v189 = vshll.u32 %v180, %v187
    %v190 = vshrl.u32 %v172, %v188
    %v191 = vor.u32 %v189, %v190
    %v192 = vsub.s32 4294967266, %v187
    %v193 = vadd.s32 %v192, 127
    %v194 = vshll.u32 %v193, 23
    %v195 = vor.u32 4788187, %v194
    %v196 = vand.u32 2147483647, %v195
    %v198 = vcvt.s32.f32 %v191
    %v199 = vmul.f32 %v198, %v196
    %v200 = vxor.u32 %v199, 2147483648
    %v201 = vsel %vm80, %v200, %v199
    %v202 = vsub.s32 4, %v178
    %v203 = vsel %vm80, %v202, %v178
    %v204 = vsel %vm79, %v76, %v201
    %v205 = vsel %vm79, 0, %v203
    %v206 = vmul.f32 %v204, %v204
    %v207 = vmul.f32 %v206, -0.001358992
    %v208 = vadd.f32 %v207, 0.041655596
    %v209 = vmul.f32 %v206, %v208
    %v210 = vadd.f32 %v209, -0.4999988
    %v211 = vmul.f32 %v206, %v210
    %v212 = vadd.f32 1.0, %v211
    %v213 = vmul.f32 %v204, %v204
    %v214 = vmul.f32 %v213, -0.00019511016
    %v215 = vadd.f32 %v214, 0.008332121
    %v216 = vmul.f32 %v213, %v215
    %v217 = vadd.f32 %v216, -0.16666654
    %v218 = vmul.f32 %v213, %v217
    %v219 = vadd.f32 %v218, 1.0
    %v220 = vmul.f32 %v219, %v204
    %vm221 = vweird.f32 %v76
    %v222 = vadd.s32 %v205, 3
    %v223 = vand.u32 %v222, 3
    %vm224 = vcmp.lt.s32.totalorder %v223, 2
    %vm225 = vcmp.eq.s32.totalorder %v223, 0
    %v226 = vxor.u32 %v220, 2147483648
    %v227 = vsel %vm225, %v212, %v226
    %vm228 = vcmp.eq.s32.totalorder %v223, 2
    %v229 = vxor.u32 %v212, 2147483648
    %v230 = vsel %vm228, %v229, %v220
    %v231 = vsel %vm224, %v227, %v230
    %v232 = vsel %vm221, nan, %v231
    %233 = vst [vmem:[#allocation7] sm:$0xff] %v232
    // Predicated region
    $region22: #{tpu_custom_call.1} parent=1 // pred_check
      _
    $region23: #{tpu_custom_call.1} parent=1 // pred_check_branch
      %235 = sbr.rel (0) target = $region25
    $region24: #{tpu_custom_call.1} parent=1 // pred_region
      %237 = vsyncadd [#allocation4], 0
      %s239 = sshll.u32 [#allocation7], 4
      %s240 = int_to_ptr.vmem [resolvable:$true] %s239
      %s241 = sshll.u32 %s3, 4
      %s242 = int_to_ptr.hbm [resolvable:$true] %s241
      %244 = dma.vmem_to_hbm [thread:$0]  %s240, 128, %s242, [#allocation4]
    $region25: #{tpu_custom_call.1} parent=1 // pred_fallthru
      _
    // Predicated region
    $region26: #{tpu_custom_call.1} parent=1 // pred_check
      _
    $region27: #{tpu_custom_call.1} parent=1 // pred_check_branch
      %246 = sbr.rel (0) target = $region29
    $region28: #{tpu_custom_call.1} parent=1 // pred_region
      %248 = dma.done [#allocation4], 128
    $region29: #{tpu_custom_call.1} parent=1 // pred_fallthru
      _
    %249 = vsyncpa [#allocation3], 1
    %250 = vsyncpa [#allocation6], 1
    %251 = vsyncpa [#allocation4], 1

</llo_original>
